<compile_context>
chip_gen: v5e
topology: v5e:2x2
jax: 0.10.0
libtpu: 0.0.40
codegen_flags: <defaults>
</compile_context>

<pallas_src>
import functools

import jax
import jax.numpy as jnp
from jax.experimental import pallas as pl
from jax.experimental.pallas import tpu as pltpu

BN_EPS = 1e-5        # nn.BatchNorm1d default eps
NORM_EPS = 1e-12     # F.normalize default eps

_MiB = 1024 * 1024
_VMEM_BUDGET = 40 * _MiB      # conservative across v5e/v6e (128 MiB) and v7x (64 MiB physical)
_VMEM_LIMIT_CAP = 48 * _MiB   # never request more scoped VMEM than this
_VMEM_LIMIT_FLOOR = 8 * _MiB  # generous floor for compiler scratch on tiny problems


# ---------------------------------------------------------------------------
# Shared in-kernel math (f32 VPU work on bf16-MXU outputs)
# ---------------------------------------------------------------------------
def _bn_relu(h, gamma_row, beta_row, true_b):
    """Train-mode BatchNorm1d (batch stats, biased variance) + ReLU on an f32 [Bp, T] tile.

    Single-pass stats (sum and sum-of-squares -> one cross-sublane reduction each). The mean is
    folded into the affine shift so the per-element work is just mul + add + max. Padded (all-zero)
    rows contribute nothing to the sums; the divisor is the true batch size.
    """
    inv_b = jnp.float32(1.0 / true_b)
    s = jnp.sum(h, axis=0, keepdims=True)                 # [1, T]
    sq = jnp.sum(h * h, axis=0, keepdims=True)            # [1, T]
    mean = s * inv_b
    var = jnp.maximum(sq * inv_b - mean * mean, 0.0)      # clamp tiny negatives from rounding
    scale = jax.lax.rsqrt(var + BN_EPS) * gamma_row       # fold gamma into the scale
    shift = beta_row - mean * scale                       # fold mean into the shift (row-level op)
    return jnp.maximum(h * scale + shift, 0.0)


def _l2_normalize_rows(y):
    """F.normalize(dim=1): y / max(||y||, eps) == y * rsqrt(max(sum(y^2), eps^2))."""
    sumsq = jnp.sum(y * y, axis=1, keepdims=True)
    return y * jax.lax.rsqrt(jnp.maximum(sumsq, NORM_EPS * NORM_EPS))


# ---------------------------------------------------------------------------
# Kernels
# ---------------------------------------------------------------------------
def _projection_single_kernel(x_ref, w1_ref, gamma_ref, beta_ref, w2_ref, o_ref, *, true_b):
    """Single-step path: everything resident in VMEM, no grid, no accumulator."""
    h = jnp.dot(x_ref[...], w1_ref[...], preferred_element_type=jnp.float32)     # [Bp, H] f32
    hr = _bn_relu(h, gamma_ref[...], beta_ref[...], true_b)
    y = jnp.dot(hr.astype(jnp.bfloat16), w2_ref[...], preferred_element_type=jnp.float32)
    o_ref[...] = _l2_normalize_rows(y).astype(o_ref.dtype)


def _projection_tiled_kernel(x_hbm, w1_ref, gamma_ref, beta_ref, w2_ref, o_ref,
                             x_vmem, x_sem, acc_ref, *, true_b):
    """H-tiled streaming path: H is the Linear2 reduction grid axis."""
    k = pl.program_id(0)

    @pl.when(k == 0)
    def _load_x_once():
        # x never changes across the grid: DMA it HBM->VMEM exactly once and keep it resident
        # in scratch (no dead second pipeline buffer for a constant block).
        cp = pltpu.make_async_copy(x_hbm, x_vmem, x_sem)
        cp.start()
        cp.wait()

    # ---- Linear1 H-panel: h = x @ w1[:, panel]   (bf16 MXU, f32 accumulate; b1 cancels in BN) ----
    h = jnp.dot(x_vmem[...], w1_ref[...], preferred_element_type=jnp.float32)    # [Bp, th] f32
    hr = _bn_relu(h, gamma_ref[...], beta_ref[...], true_b)

    # ---- Linear2 partial-K: acc (+)= relu(bn(h)) @ w2[panel, :] ----
    part = jnp.dot(hr.astype(jnp.bfloat16), w2_ref[...], preferred_element_type=jnp.float32)

    @pl.when(k == 0)
    def _first():
        acc_ref[...] = part          # write first partial directly (no zero-init + add)

    @pl.when(k > 0)
    def _rest():
        acc_ref[...] += part

    @pl.when(k == pl.num_programs(0) - 1)
    def _finalize():
        o_ref[...] = _l2_normalize_rows(acc_ref[...]).astype(o_ref.dtype)


# ---------------------------------------------------------------------------
# Residency estimates / tile selection
# ---------------------------------------------------------------------------
def _single_step_bytes(bp, din, h, dout):
    return (bp * din * 2            # x bf16
            + din * h * 2           # w1 bf16
            + h * dout * 2          # w2 bf16
            + 2 * h * 4             # gamma + beta f32
            + bp * dout * 4         # output f32
            + bp * h * 4            # f32 hidden temporary
            + bp * dout * 4)        # f32 pre-normalize temporary


def _tiled_bytes(bp, din, th, dout):
    return (bp * din * 2            # x resident in VMEM scratch (single buffer)
            + 2 * din * th * 2      # w1 panel, double-buffered
            + 2 * th * dout * 2     # w2 panel, double-buffered
            + 2 * 2 * th * 4        # gamma/beta tiles, double-buffered
            + bp * dout * 4         # f32 accumulator scratch
            + bp * dout * 4         # resident output block
            + bp * th * 4)          # f32 hidden temporary


def _pick_tile_h(bp, din, h, dout):
    # Prefer 256-multiples (fill the 2x256^2 MXU on v6e/v7x); 128 only as a fallback
    # (fine on v5e's 4x128^2 MXU or when H is not a 256-multiple).
    for t in (512, 256, 128):
        if h % t == 0 and _tiled_bytes(bp, din, t, dout) <= _VMEM_BUDGET:
            return t
    return h   # full-H panel (block equal to the full dim is always legal)


def _vmem_limit(nbytes):
    sized = int(nbytes * 1.25) + 2 * _MiB
    return int(min(max(sized, _VMEM_LIMIT_FLOOR), _VMEM_LIMIT_CAP))


# ---------------------------------------------------------------------------
# Wrapper
# ---------------------------------------------------------------------------
def projection_forward(x, w1, b1, gamma, beta, w2, *, tile_h=None):
    """x: [B, Din] f32. Params follow the PyTorch module. Returns [B, Dout] f32.

    b1 is accepted for API parity but unused: under training-mode BatchNorm with batch statistics
    the Linear1 bias cancels exactly. (If eval-mode BN with running stats were ever required, b1
    would have to be added back.)
    """
    del b1
    B, Din = x.shape
    H = w1.shape[1]
    Dout = w2.shape[1]

    # Pad batch to a multiple of 16 (bf16 packs 16 rows per sublane group); zero rows contribute
    # nothing to the BN sums and are sliced off after the call.
    Bp = ((B + 15) // 16) * 16
    if Bp != B:
        x = jnp.pad(x, ((0, Bp - B), (0, 0)))

    # Cast MXU operands to bf16 once here (not per grid step inside the kernel).
    x_bf = x.astype(jnp.bfloat16)
    w1_bf = w1.astype(jnp.bfloat16)
    w2_bf = w2.astype(jnp.bfloat16)
    gamma2 = gamma.reshape(1, H).astype(jnp.float32)
    beta2 = beta.reshape(1, H).astype(jnp.float32)

    # ---------------- single-step path: everything resident, no grid, no accumulator -------------
    if tile_h is None and _single_step_bytes(Bp, Din, H, Dout) <= _VMEM_BUDGET:
        kernel = functools.partial(_projection_single_kernel, true_b=float(B))
        out = pl.pallas_call(
            kernel,
            out_shape=jax.ShapeDtypeStruct((Bp, Dout), jnp.float32),
            in_specs=[pl.BlockSpec(memory_space=pltpu.MemorySpace.VMEM)] * 5,
            out_specs=pl.BlockSpec(memory_space=pltpu.MemorySpace.VMEM),
            compiler_params=pltpu.CompilerParams(
                vmem_limit_bytes=_vmem_limit(_single_step_bytes(Bp, Din, H, Dout))),
        )(x_bf, w1_bf, gamma2, beta2, w2_bf)
        return out[:B]

    # ---------------- H-tiled streaming path: hidden dim is the Linear2 reduction axis -----------
    th = _pick_tile_h(Bp, Din, H, Dout) if tile_h is None else int(tile_h)
    assert H % th == 0, "tile_h must divide hidden_dim"
    n_panels = H // th

    # Pre-reshape w1 so each streamed H-panel is one contiguous HBM slab: (H//th, Din, th).
    w1_panels = w1_bf.reshape(Din, n_panels, th).transpose(1, 0, 2)

    kernel = functools.partial(_projection_tiled_kernel, true_b=float(B))
    out = pl.pallas_call(
        kernel,
        out_shape=jax.ShapeDtypeStruct((Bp, Dout), jnp.float32),
        grid_spec=pltpu.PrefetchScalarGridSpec(
            num_scalar_prefetch=0,
            grid=(n_panels,),                                        # H = Linear2 reduction axis
            in_specs=[
                pl.BlockSpec(memory_space=pl.ANY),                   # x: HBM, DMA'd once to scratch
                pl.BlockSpec((None, Din, th), lambda k: (k, 0, 0)),  # w1 panel (contiguous slab)
                pl.BlockSpec((1, th), lambda k: (0, k)),             # gamma tile
                pl.BlockSpec((1, th), lambda k: (0, k)),             # beta tile
                pl.BlockSpec((th, Dout), lambda k: (k, 0)),          # w2 K-panel (contiguous)
            ],
            out_specs=pl.BlockSpec((Bp, Dout), lambda k: (0, 0)),    # lane-dense full-Dout output
            scratch_shapes=[
                pltpu.VMEM((Bp, Din), jnp.bfloat16),                 # x resident (single copy)
                pltpu.SemaphoreType.DMA(()),                         # sem for the one-time x DMA
                pltpu.VMEM((Bp, Dout), jnp.float32),                 # Linear2 f32 accumulator
            ],
        ),
        compiler_params=pltpu.CompilerParams(
            dimension_semantics=("arbitrary",),                      # reduction axis
            vmem_limit_bytes=_vmem_limit(_tiled_bytes(Bp, Din, th, Dout)),
        ),
    )(x_bf, w1_panels, gamma2, beta2, w2_bf)
    return out[:B]


# ---------------------------------------------------------------------------
# Pure-JAX reference and deterministic init
# ---------------------------------------------------------------------------
def projection_reference(x, w1, b1, gamma, beta, w2):
    """Pure-JAX f32 reference matching the PyTorch module (training-mode BN), incl. b1."""
    h = x @ w1 + b1.reshape(1, -1)
    mean = jnp.mean(h, axis=0, keepdims=True)
    var = jnp.mean((h - mean) ** 2, axis=0, keepdims=True)
    h = (h - mean) * jax.lax.rsqrt(var + BN_EPS) * gamma.reshape(1, -1) + beta.reshape(1, -1)
    h = jnp.maximum(h, 0.0)
    y = h @ w2
    n = jnp.sqrt(jnp.sum(y * y, axis=1, keepdims=True))
    return y / jnp.maximum(n, NORM_EPS)


def init_params(key, input_dim, hidden_dim, output_dim):
    """Deterministic synthetic parameters (PyTorch-like uniform fan-in init)."""
    k1, k2, k3 = jax.random.split(key, 3)
    bound1 = 1.0 / (input_dim ** 0.5)
    w1 = jax.random.uniform(k1, (input_dim, hidden_dim), jnp.float32, -bound1, bound1)
    b1 = jax.random.uniform(k2, (hidden_dim,), jnp.float32, -bound1, bound1)
    gamma = jnp.ones((hidden_dim,), jnp.float32)   # BatchNorm1d affine weight init
    beta = jnp.zeros((hidden_dim,), jnp.float32)   # BatchNorm1d affine bias init
    bound2 = 1.0 / (hidden_dim ** 0.5)
    w2 = jax.random.uniform(k3, (hidden_dim, output_dim), jnp.float32, -bound2, bound2)
    return w1, b1, gamma, beta, w2


if __name__ == "__main__":
    # Small shapes consistent with the module (defaults 512/512/128); H=512 lets the forced tiled
    # path use a 256-wide (MXU-filling) panel with a real 2-step reduction grid.
    B, INPUT_DIM, HIDDEN_DIM, OUTPUT_DIM = 32, 256, 512, 128

    key = jax.random.PRNGKey(0)
    kx, kp = jax.random.split(key)
    x = jax.random.normal(kx, (B, INPUT_DIM), dtype=jnp.float32)
    w1, b1, gamma, beta, w2 = init_params(kp, INPUT_DIM, HIDDEN_DIM, OUTPUT_DIM)

    ref = projection_reference(x, w1, b1, gamma, beta, w2)

    # Path 1: auto -> single-step (everything resident, no grid) for these shapes.
    out_single = jax.block_until_ready(projection_forward(x, w1, b1, gamma, beta, w2))
    # Path 2: forced H-tiled streaming path (exercises the reduction grid + one-time x DMA).
    out_tiled = jax.block_until_ready(projection_forward(x, w1, b1, gamma, beta, w2, tile_h=256))

    for out in (out_single, out_tiled):
        assert out.shape == (B, OUTPUT_DIM)
        # Rows are L2-normalized in f32 inside the kernel -> unit norm to tight tolerance.
        row_norms = jnp.linalg.norm(out, axis=1)
        assert bool(jnp.all(jnp.abs(row_norms - 1.0) < 1e-4))
        # Matches the f32 reference (incl. the b1 the kernel drops) within bf16-matmul tolerance.
        assert bool(jnp.max(jnp.abs(out - ref)) < 3e-2)

    print("KERNEL_OK")
</pallas_src>

<mosaic_0001>
module attributes {stable_mosaic.version = 11 : i64} {
  func.func @_projection_single_kernel(%arg0: memref<32x256xbf16, #tpu.memory_space<vmem>>, %arg1: memref<256x512xbf16, #tpu.memory_space<vmem>>, %arg2: memref<1x512xf32, #tpu.memory_space<vmem>>, %arg3: memref<1x512xf32, #tpu.memory_space<vmem>>, %arg4: memref<512x128xbf16, #tpu.memory_space<vmem>>, %arg5: memref<32x128xf32, #tpu.memory_space<vmem>>) attributes {dimension_semantics = [], scalar_prefetch = 0 : i64, scratch_operands = 0 : i64, tpu.core_type = #tpu.core_type<tc>} {
    %c0 = arith.constant 0 : index
    %c0_0 = arith.constant 0 : index
    %0 = vector.load %arg0[%c0, %c0_0] : memref<32x256xbf16, #tpu.memory_space<vmem>>, vector<32x256xbf16>
    %c0_1 = arith.constant 0 : index
    %c0_2 = arith.constant 0 : index
    %1 = vector.load %arg1[%c0_1, %c0_2] : memref<256x512xbf16, #tpu.memory_space<vmem>>, vector<256x512xbf16>
    %cst = arith.constant dense<0.000000e+00> : vector<32x512xf32>
    %2 = tpu.matmul %0, %1, %cst {dimension_numbers = #tpu.dot_dimension_numbers<[1], [0], [0], [1], [0, 0, 1, 1], [], []>} : vector<32x256xbf16>, vector<256x512xbf16>, vector<32x512xf32> -> vector<32x512xf32>
    %c0_3 = arith.constant 0 : index
    %c0_4 = arith.constant 0 : index
    %3 = vector.load %arg2[%c0_3, %c0_4] : memref<1x512xf32, #tpu.memory_space<vmem>>, vector<1x512xf32>
    %c0_5 = arith.constant 0 : index
    %c0_6 = arith.constant 0 : index
    %4 = vector.load %arg3[%c0_5, %c0_6] : memref<1x512xf32, #tpu.memory_space<vmem>>, vector<1x512xf32>
    %cst_7 = arith.constant dense<0.000000e+00> : vector<512xf32>
    %5 = vector.multi_reduction <add>, %2, %cst_7 [0] : vector<32x512xf32> to vector<512xf32>
    %6 = vector.shape_cast %5 : vector<512xf32> to vector<1x512xf32>
    %7 = arith.mulf %2, %2 : vector<32x512xf32>
    %cst_8 = arith.constant dense<0.000000e+00> : vector<512xf32>
    %8 = vector.multi_reduction <add>, %7, %cst_8 [0] : vector<32x512xf32> to vector<512xf32>
    %9 = vector.shape_cast %8 : vector<512xf32> to vector<1x512xf32>
    %cst_9 = arith.constant 3.125000e-02 : f32
    %10 = vector.broadcast %cst_9 : f32 to vector<1x512xf32>
    %11 = arith.mulf %6, %10 : vector<1x512xf32>
    %cst_10 = arith.constant 3.125000e-02 : f32
    %12 = vector.broadcast %cst_10 : f32 to vector<1x512xf32>
    %13 = arith.mulf %9, %12 : vector<1x512xf32>
    %14 = arith.mulf %11, %11 : vector<1x512xf32>
    %15 = arith.subf %13, %14 : vector<1x512xf32>
    %cst_11 = arith.constant 0.000000e+00 : f32
    %16 = vector.broadcast %cst_11 : f32 to vector<1x512xf32>
    %17 = arith.maximumf %15, %16 : vector<1x512xf32>
    %cst_12 = arith.constant 9.99999974E-6 : f32
    %18 = vector.broadcast %cst_12 : f32 to vector<1x512xf32>
    %19 = arith.addf %17, %18 : vector<1x512xf32>
    %20 = math.rsqrt %19 : vector<1x512xf32>
    %21 = arith.mulf %20, %3 : vector<1x512xf32>
    %22 = arith.mulf %11, %21 : vector<1x512xf32>
    %23 = arith.subf %4, %22 : vector<1x512xf32>
    %24 = vector.broadcast %21 : vector<1x512xf32> to vector<32x512xf32>
    %25 = arith.mulf %2, %24 : vector<32x512xf32>
    %26 = vector.broadcast %23 : vector<1x512xf32> to vector<32x512xf32>
    %27 = arith.addf %25, %26 : vector<32x512xf32>
    %cst_13 = arith.constant 0.000000e+00 : f32
    %28 = vector.broadcast %cst_13 : f32 to vector<32x512xf32>
    %29 = arith.maximumf %27, %28 : vector<32x512xf32>
    %30 = arith.truncf %29 : vector<32x512xf32> to vector<32x512xbf16>
    %c0_14 = arith.constant 0 : index
    %c0_15 = arith.constant 0 : index
    %31 = vector.load %arg4[%c0_14, %c0_15] : memref<512x128xbf16, #tpu.memory_space<vmem>>, vector<512x128xbf16>
    %cst_16 = arith.constant dense<0.000000e+00> : vector<32x128xf32>
    %32 = tpu.matmul %30, %31, %cst_16 {dimension_numbers = #tpu.dot_dimension_numbers<[1], [0], [0], [1], [0, 0, 1, 1], [], []>} : vector<32x512xbf16>, vector<512x128xbf16>, vector<32x128xf32> -> vector<32x128xf32>
    %33 = arith.mulf %32, %32 : vector<32x128xf32>
    %cst_17 = arith.constant dense<0.000000e+00> : vector<32xf32>
    %34 = vector.multi_reduction <add>, %33, %cst_17 [1] : vector<32x128xf32> to vector<32xf32>
    %35 = vector.shape_cast %34 : vector<32xf32> to vector<32x1xf32>
    %cst_18 = arith.constant 1.000000e-24 : f32
    %36 = vector.broadcast %cst_18 : f32 to vector<32x1xf32>
    %37 = arith.maximumf %35, %36 : vector<32x1xf32>
    %38 = math.rsqrt %37 : vector<32x1xf32>
    %39 = vector.broadcast %38 : vector<32x1xf32> to vector<32x128xf32>
    %40 = arith.mulf %32, %39 : vector<32x128xf32>
    %c0_19 = arith.constant 0 : index
    %c0_20 = arith.constant 0 : index
    %41 = vector.load %arg5[%c0_19, %c0_20] : memref<32x128xf32, #tpu.memory_space<vmem>>, vector<32x128xf32>
    tpu.vector_store %arg5[%c0_19, %c0_20], %40 {strides = array<i32>} : memref<32x128xf32, #tpu.memory_space<vmem>>, vector<32x128xf32>,
    return
  }
}

</mosaic_0001>

<llo_original>
// kernel: tpu_custom_call.1
$region0: #{tpu_custom_call.1}
  #allocation0 [shape = 'u32[]', space=smem, size = 0x4, offset = 0x4, fixed_abs, tag = 'smem constant byte address 0x4 - core index']
  #allocation1 [shape = 'u32[72,128]{1,0:T(1,128)}', space=vmem, size = 0x9000, scoped, tag = 'internal scratch']
  %s0 = inlined_call_operand.hbm [shape: bf16[32,256], index: 0, kind: input, shape index: {}]
  %s1 = inlined_call_operand.hbm [shape: bf16[256,512], index: 1, kind: input, shape index: {}]
  %s2 = inlined_call_operand.hbm [shape: f32[1,512], index: 2, kind: input, shape index: {}]
  %s3 = inlined_call_operand.hbm [shape: f32[1,512], index: 3, kind: input, shape index: {}]
  %s4 = inlined_call_operand.hbm [shape: bf16[512,128], index: 4, kind: input, shape index: {}]
  %s5 = inlined_call_operand.hbm [shape: f32[32,128], index: 5, kind: output, shape index: {}]
  %s6 = sld [smem:[#allocation0]]
  $region50: #{tpu_custom_call.1} parent=0
    _
  %s8 = ssub.s32 1, %s6
  %s9 = scalar_select 0, %s8, %s6
  $region1: #{tpu_custom_call.1} parent=0
    #allocation2 [shape = 'u8[16384]{0}', space=vmem, size = 0x4000, scoped, tag = 'input window, operand 0, single buffered']
    #allocation3 [shape = 's32[1]{0}', space=sflag, size = 0x4, scoped, tag = 'scoped memory for tpu_custom_call.1']
    #allocation4 [shape = 's32[1]{0}', space=sflag, size = 0x4, scoped, tag = 'scoped memory for tpu_custom_call.1']
    #allocation5 [shape = 'u8[262144]{0}', space=vmem, size = 0x40000, scoped, tag = 'input window, operand 1, single buffered']
    #allocation6 [shape = 's32[1]{0}', space=sflag, size = 0x4, scoped, tag = 'scoped memory for tpu_custom_call.1']
    #allocation7 [shape = 'u8[2048]{0}', space=vmem, size = 0x800, scoped, tag = 'input window, operand 2, single buffered']
    #allocation8 [shape = 'u8[2048]{0}', space=vmem, size = 0x800, scoped, tag = 'input window, operand 3, single buffered']
    #allocation9 [shape = 's32[1]{0}', space=sflag, size = 0x4, scoped, tag = 'scoped memory for tpu_custom_call.1']
    #allocation10 [shape = 'u8[131072]{0}', space=vmem, size = 0x20000, scoped, tag = 'input window, operand 4, single buffered']
    #allocation11 [shape = 'u8[16384]{0}', space=vmem, size = 0x4000, scoped, tag = 'output window, operand 0, single buffered']
    %10 = vsyncpa [#allocation3], 0
    %11 = vsyncpa [#allocation6], 0
    %12 = vsyncpa [#allocation9], 0
    %13 = vsyncpa [#allocation4], 0
    // Predicated region
    $region2: #{tpu_custom_call.1} parent=1 // pred_check
      _
    $region3: #{tpu_custom_call.1} parent=1 // pred_check_branch
      %15 = sbr.rel (0) target = $region5
    $region4: #{tpu_custom_call.1} parent=1 // pred_region
      %17 = vsyncadd [#allocation3], 0
      %s18 = sshll.u32 %s0, 4
      %s19 = int_to_ptr.hbm [resolvable:$true] %s18
      %s20 = sshll.u32 [#allocation2], 4
      %s21 = int_to_ptr.vmem [resolvable:$true] %s20
      %26 = dma.hbm_to_vmem [thread:$0]  %s19, 512, %s21, [#allocation3], 128, 128, 8
    $region5: #{tpu_custom_call.1} parent=1 // pred_fallthru
      _
    // Predicated region
    $region6: #{tpu_custom_call.1} parent=1 // pred_check
      _
    $region7: #{tpu_custom_call.1} parent=1 // pred_check_branch
      %28 = sbr.rel (0) target = $region9
    $region8: #{tpu_custom_call.1} parent=1 // pred_region
      %30 = vsyncadd [#allocation6], 0
      %s31 = sshll.u32 %s1, 4
      %s32 = int_to_ptr.hbm [resolvable:$true] %s31
      %s33 = sshll.u32 [#allocation5], 4
      %s34 = int_to_ptr.vmem [resolvable:$true] %s33
      %39 = dma.hbm_to_vmem [thread:$0]  %s32, 8192, %s34, [#allocation6], 256, 256, 16
    $region9: #{tpu_custom_call.1} parent=1 // pred_fallthru
      _
    // Predicated region
    $region10: #{tpu_custom_call.1} parent=1 // pred_check
      _
    $region11: #{tpu_custom_call.1} parent=1 // pred_check_branch
      %41 = sbr.rel (0) target = $region13
    $region12: #{tpu_custom_call.1} parent=1 // pred_region
      %43 = vsyncadd [#allocation6], 0
      %s45 = sshll.u32 %s2, 4
      %s46 = int_to_ptr.hbm [resolvable:$true] %s45
      %s47 = sshll.u32 [#allocation7], 4
      %s48 = int_to_ptr.vmem [resolvable:$true] %s47
      %50 = dma.hbm_to_vmem [thread:$0]  %s46, 64, %s48, [#allocation6]
    $region13: #{tpu_custom_call.1} parent=1 // pred_fallthru
      _
    // Predicated region
    $region14: #{tpu_custom_call.1} parent=1 // pred_check
      _
    $region15: #{tpu_custom_call.1} parent=1 // pred_check_branch
      %52 = sbr.rel (0) target = $region17
    $region16: #{tpu_custom_call.1} parent=1 // pred_region
      %54 = vsyncadd [#allocation9], 0
      %s56 = sshll.u32 %s3, 4
      %s57 = int_to_ptr.hbm [resolvable:$true] %s56
      %s58 = sshll.u32 [#allocation8], 4
      %s59 = int_to_ptr.vmem [resolvable:$true] %s58
      %61 = dma.hbm_to_vmem [thread:$0]  %s57, 64, %s59, [#allocation9]
    $region17: #{tpu_custom_call.1} parent=1 // pred_fallthru
      _
    // Predicated region
    $region18: #{tpu_custom_call.1} parent=1 // pred_check
      _
    $region19: #{tpu_custom_call.1} parent=1 // pred_check_branch
      %63 = sbr.rel (0) target = $region21
    $region20: #{tpu_custom_call.1} parent=1 // pred_region
      %65 = vsyncadd [#allocation9], 0
      %s66 = sshll.u32 %s4, 4
      %s67 = int_to_ptr.hbm [resolvable:$true] %s66
      %s68 = sshll.u32 [#allocation10], 4
      %s69 = int_to_ptr.vmem [resolvable:$true] %s68
      %74 = dma.hbm_to_vmem [thread:$0]  %s67, 4096, %s69, [#allocation9], 64, 64, 4
    $region21: #{tpu_custom_call.1} parent=1 // pred_fallthru
      _
    // Predicated region
    $region22: #{tpu_custom_call.1} parent=1 // pred_check
      _
    $region23: #{tpu_custom_call.1} parent=1 // pred_check_branch
      %76 = sbr.rel (0) target = $region25
    $region24: #{tpu_custom_call.1} parent=1 // pred_region
      %78 = dma.done [#allocation3], 512
    $region25: #{tpu_custom_call.1} parent=1 // pred_fallthru
      _
    // Predicated region
    $region26: #{tpu_custom_call.1} parent=1 // pred_check
      _
    $region27: #{tpu_custom_call.1} parent=1 // pred_check_branch
      %80 = sbr.rel (0) target = $region29
    $region28: #{tpu_custom_call.1} parent=1 // pred_region
      %82 = dma.done [#allocation6], 8192
    $region29: #{tpu_custom_call.1} parent=1 // pred_fallthru
      _
    // Predicated region
    $region30: #{tpu_custom_call.1} parent=1 // pred_check
      _
    $region31: #{tpu_custom_call.1} parent=1 // pred_check_branch
      %84 = sbr.rel (0) target = $region33
    $region32: #{tpu_custom_call.1} parent=1 // pred_region
      %86 = dma.done [#allocation6], 64
    $region33: #{tpu_custom_call.1} parent=1 // pred_fallthru
      _
    // Predicated region
    $region34: #{tpu_custom_call.1} parent=1 // pred_check
      _
    $region35: #{tpu_custom_call.1} parent=1 // pred_check_branch
      %88 = sbr.rel (0) target = $region37
    $region36: #{tpu_custom_call.1} parent=1 // pred_region
      %90 = dma.done [#allocation9], 64
    $region37: #{tpu_custom_call.1} parent=1 // pred_fallthru
      _
    // Predicated region
    $region38: #{tpu_custom_call.1} parent=1 // pred_check
      _
    $region39: #{tpu_custom_call.1} parent=1 // pred_check_branch
      %92 = sbr.rel (0) target = $region41
    $region40: #{tpu_custom_call.1} parent=1 // pred_region
      %94 = dma.done [#allocation9], 4096
    $region41: #{tpu_custom_call.1} parent=1 // pred_fallthru
      _
    %v95 = vld [vmem:[#allocation2] sm:$0xff]
    %v96 = vld [vmem:[#allocation2 + $0x8] sm:$0xff]
    %v97 = vld [vmem:[#allocation2 + $0x10] sm:$0xff]
    %v98 = vld [vmem:[#allocation2 + $0x18] sm:$0xff]
    %v99 = vld [vmem:[#allocation5] sm:$0xff]
    %v100 = vld [vmem:[#allocation5 + $0x8] sm:$0xff]
    %v101 = vld [vmem:[#allocation5 + $0x10] sm:$0xff]
    %v102 = vld [vmem:[#allocation5 + $0x18] sm:$0xff]
    %v103 = vld [vmem:[#allocation5 + $0x20] sm:$0xff]
    %v104 = vld [vmem:[#allocation5 + $0x28] sm:$0xff]
    %v105 = vld [vmem:[#allocation5 + $0x30] sm:$0xff]
    %v106 = vld [vmem:[#allocation5 + $0x38] sm:$0xff]
    %v107 = vld [vmem:[#allocation5 + $0x40] sm:$0xff]
    %v108 = vld [vmem:[#allocation5 + $0x48] sm:$0xff]
    %v109 = vld [vmem:[#allocation5 + $0x50] sm:$0xff]
    %v110 = vld [vmem:[#allocation5 + $0x58] sm:$0xff]
    %v111 = vld [vmem:[#allocation5 + $0x60] sm:$0xff]
    %v112 = vld [vmem:[#allocation5 + $0x68] sm:$0xff]
    %v113 = vld [vmem:[#allocation5 + $0x70] sm:$0xff]
    %v114 = vld [vmem:[#allocation5 + $0x78] sm:$0xff]
    %v115 = vld [vmem:[#allocation5 + $0x80] sm:$0xff]
    %v116 = vld [vmem:[#allocation5 + $0x88] sm:$0xff]
    %v117 = vld [vmem:[#allocation5 + $0x90] sm:$0xff]
    %v118 = vld [vmem:[#allocation5 + $0x98] sm:$0xff]
    %v119 = vld [vmem:[#allocation5 + $0xa0] sm:$0xff]
    %v120 = vld [vmem:[#allocation5 + $0xa8] sm:$0xff]
    %v121 = vld [vmem:[#allocation5 + $0xb0] sm:$0xff]
    %v122 = vld [vmem:[#allocation5 + $0xb8] sm:$0xff]
    %v123 = vld [vmem:[#allocation5 + $0xc0] sm:$0xff]
    %v124 = vld [vmem:[#allocation5 + $0xc8] sm:$0xff]
    %v125 = vld [vmem:[#allocation5 + $0xd0] sm:$0xff]
    %v126 = vld [vmem:[#allocation5 + $0xd8] sm:$0xff]
    %v127 = vld [vmem:[#allocation5 + $0xe0] sm:$0xff]
    %v128 = vld [vmem:[#allocation5 + $0xe8] sm:$0xff]
    %v129 = vld [vmem:[#allocation5 + $0xf0] sm:$0xff]
    %v130 = vld [vmem:[#allocation5 + $0xf8] sm:$0xff]
    %v131 = vld [vmem:[#allocation5 + $0x100] sm:$0xff]
    %v132 = vld [vmem:[#allocation5 + $0x108] sm:$0xff]
    %v133 = vld [vmem:[#allocation5 + $0x110] sm:$0xff]
    %v134 = vld [vmem:[#allocation5 + $0x118] sm:$0xff]
    %v135 = vld [vmem:[#allocation5 + $0x120] sm:$0xff]
    %v136 = vld [vmem:[#allocation5 + $0x128] sm:$0xff]
    %v137 = vld [vmem:[#allocation5 + $0x130] sm:$0xff]
    %v138 = vld [vmem:[#allocation5 + $0x138] sm:$0xff]
    %v139 = vld [vmem:[#allocation5 + $0x140] sm:$0xff]
    %v140 = vld [vmem:[#allocation5 + $0x148] sm:$0xff]
    %v141 = vld [vmem:[#allocation5 + $0x150] sm:$0xff]
    %v142 = vld [vmem:[#allocation5 + $0x158] sm:$0xff]
    %v143 = vld [vmem:[#allocation5 + $0x160] sm:$0xff]
    %v144 = vld [vmem:[#allocation5 + $0x168] sm:$0xff]
    %v145 = vld [vmem:[#allocation5 + $0x170] sm:$0xff]
    %v146 = vld [vmem:[#allocation5 + $0x178] sm:$0xff]
    %v147 = vld [vmem:[#allocation5 + $0x180] sm:$0xff]
    %v148 = vld [vmem:[#allocation5 + $0x188] sm:$0xff]
    %v149 = vld [vmem:[#allocation5 + $0x190] sm:$0xff]
    %v150 = vld [vmem:[#allocation5 + $0x198] sm:$0xff]
    %v151 = vld [vmem:[#allocation5 + $0x1a0] sm:$0xff]
    %v152 = vld [vmem:[#allocation5 + $0x1a8] sm:$0xff]
    %v153 = vld [vmem:[#allocation5 + $0x1b0] sm:$0xff]
    %v154 = vld [vmem:[#allocation5 + $0x1b8] sm:$0xff]
    %v155 = vld [vmem:[#allocation5 + $0x1c0] sm:$0xff]
    %v156 = vld [vmem:[#allocation5 + $0x1c8] sm:$0xff]
    %v157 = vld [vmem:[#allocation5 + $0x1d0] sm:$0xff]
    %v158 = vld [vmem:[#allocation5 + $0x1d8] sm:$0xff]
    %v159 = vld [vmem:[#allocation5 + $0x1e0] sm:$0xff]
    %v160 = vld [vmem:[#allocation5 + $0x1e8] sm:$0xff]
    %v161 = vld [vmem:[#allocation5 + $0x1f0] sm:$0xff]
    %v162 = vld [vmem:[#allocation5 + $0x1f8] sm:$0xff]
    %v167 = vunpack.c.l.b16 %v95
    %v168 = vunpack.c.h.b16 %v95
    %v169 = vunpack.c.l.b16 %v96
    %v170 = vunpack.c.h.b16 %v96
    %v171 = vunpack.c.l.b16 %v97
    %v172 = vunpack.c.h.b16 %v97
    %v173 = vunpack.c.l.b16 %v98
    %v174 = vunpack.c.h.b16 %v98
    %v175 = vpack.c.b16 %v169, %v167
    %v176 = vpack.c.b16 %v170, %v168
    %v177 = vpack.c.b16 %v173, %v171
    %v178 = vpack.c.b16 %v174, %v172
    %v247 = vunpack.c.l.b16 %v99
    %v248 = vunpack.c.h.b16 %v99
    %v249 = vunpack.c.l.b16 %v100
    %v250 = vunpack.c.h.b16 %v100
    %v251 = vunpack.c.l.b16 %v101
    %v252 = vunpack.c.h.b16 %v101
    %v253 = vunpack.c.l.b16 %v102
    %v254 = vunpack.c.h.b16 %v102
    %v255 = vunpack.c.l.b16 %v103
    %v256 = vunpack.c.h.b16 %v103
    %v257 = vunpack.c.l.b16 %v104
    %v258 = vunpack.c.h.b16 %v104
    %v259 = vunpack.c.l.b16 %v105
    %v260 = vunpack.c.h.b16 %v105
    %v261 = vunpack.c.l.b16 %v106
    %v262 = vunpack.c.h.b16 %v106
    %v263 = vunpack.c.l.b16 %v107
    %v264 = vunpack.c.h.b16 %v107
    %v265 = vunpack.c.l.b16 %v108
    %v266 = vunpack.c.h.b16 %v108
    %v267 = vunpack.c.l.b16 %v109
    %v268 = vunpack.c.h.b16 %v109
    %v269 = vunpack.c.l.b16 %v110
    %v270 = vunpack.c.h.b16 %v110
    %v271 = vunpack.c.l.b16 %v111
    %v272 = vunpack.c.h.b16 %v111
    %v273 = vunpack.c.l.b16 %v112
    %v274 = vunpack.c.h.b16 %v112
    %v275 = vunpack.c.l.b16 %v113
    %v276 = vunpack.c.h.b16 %v113
    %v277 = vunpack.c.l.b16 %v114
    %v278 = vunpack.c.h.b16 %v114
    %v279 = vunpack.c.l.b16 %v115
    %v280 = vunpack.c.h.b16 %v115
    %v281 = vunpack.c.l.b16 %v116
    %v282 = vunpack.c.h.b16 %v116
    %v283 = vunpack.c.l.b16 %v117
    %v284 = vunpack.c.h.b16 %v117
    %v285 = vunpack.c.l.b16 %v118
    %v286 = vunpack.c.h.b16 %v118
    %v287 = vunpack.c.l.b16 %v119
    %v288 = vunpack.c.h.b16 %v119
    %v289 = vunpack.c.l.b16 %v120
    %v290 = vunpack.c.h.b16 %v120
    %v291 = vunpack.c.l.b16 %v121
    %v292 = vunpack.c.h.b16 %v121
    %v293 = vunpack.c.l.b16 %v122
    %v294 = vunpack.c.h.b16 %v122
    %v295 = vunpack.c.l.b16 %v123
    %v296 = vunpack.c.h.b16 %v123
    %v297 = vunpack.c.l.b16 %v124
    %v298 = vunpack.c.h.b16 %v124
    %v299 = vunpack.c.l.b16 %v125
    %v300 = vunpack.c.h.b16 %v125
    %v301 = vunpack.c.l.b16 %v126
    %v302 = vunpack.c.h.b16 %v126
    %v303 = vunpack.c.l.b16 %v127
    %v304 = vunpack.c.h.b16 %v127
    %v305 = vunpack.c.l.b16 %v128
    %v306 = vunpack.c.h.b16 %v128
    %v307 = vunpack.c.l.b16 %v129
    %v308 = vunpack.c.h.b16 %v129
    %v309 = vunpack.c.l.b16 %v130
    %v310 = vunpack.c.h.b16 %v130
    %v311 = vunpack.c.l.b16 %v131
    %v312 = vunpack.c.h.b16 %v131
    %v313 = vunpack.c.l.b16 %v132
    %v314 = vunpack.c.h.b16 %v132
    %v315 = vunpack.c.l.b16 %v133
    %v316 = vunpack.c.h.b16 %v133
    %v317 = vunpack.c.l.b16 %v134
    %v318 = vunpack.c.h.b16 %v134
    %v319 = vunpack.c.l.b16 %v135
    %v320 = vunpack.c.h.b16 %v135
    %v321 = vunpack.c.l.b16 %v136
    %v322 = vunpack.c.h.b16 %v136
    %v323 = vunpack.c.l.b16 %v137
    %v324 = vunpack.c.h.b16 %v137
    %v325 = vunpack.c.l.b16 %v138
    %v326 = vunpack.c.h.b16 %v138
    %v327 = vunpack.c.l.b16 %v139
    %v328 = vunpack.c.h.b16 %v139
    %v329 = vunpack.c.l.b16 %v140
    %v330 = vunpack.c.h.b16 %v140
    %v331 = vunpack.c.l.b16 %v141
    %v332 = vunpack.c.h.b16 %v141
    %v333 = vunpack.c.l.b16 %v142
    %v334 = vunpack.c.h.b16 %v142
    %v335 = vunpack.c.l.b16 %v143
    %v336 = vunpack.c.h.b16 %v143
    %v337 = vunpack.c.l.b16 %v144
    %v338 = vunpack.c.h.b16 %v144
    %v339 = vunpack.c.l.b16 %v145
    %v340 = vunpack.c.h.b16 %v145
    %v341 = vunpack.c.l.b16 %v146
    %v342 = vunpack.c.h.b16 %v146
    %v343 = vunpack.c.l.b16 %v147
    %v344 = vunpack.c.h.b16 %v147
    %v345 = vunpack.c.l.b16 %v148
    %v346 = vunpack.c.h.b16 %v148
    %v347 = vunpack.c.l.b16 %v149
    %v348 = vunpack.c.h.b16 %v149
    %v349 = vunpack.c.l.b16 %v150
    %v350 = vunpack.c.h.b16 %v150
    %v351 = vunpack.c.l.b16 %v151
    %v352 = vunpack.c.h.b16 %v151
    %v353 = vunpack.c.l.b16 %v152
    %v354 = vunpack.c.h.b16 %v152
    %v355 = vunpack.c.l.b16 %v153
    %v356 = vunpack.c.h.b16 %v153
    %v357 = vunpack.c.l.b16 %v154
    %v358 = vunpack.c.h.b16 %v154
    %v359 = vunpack.c.l.b16 %v155
    %v360 = vunpack.c.h.b16 %v155
    %v361 = vunpack.c.l.b16 %v156
    %v362 = vunpack.c.h.b16 %v156
    %v363 = vunpack.c.l.b16 %v157
    %v364 = vunpack.c.h.b16 %v157
    %v365 = vunpack.c.l.b16 %v158
    %v366 = vunpack.c.h.b16 %v158
    %v367 = vunpack.c.l.b16 %v159
    %v368 = vunpack.c.h.b16 %v159
    %v369 = vunpack.c.l.b16 %v160
    %v370 = vunpack.c.h.b16 %v160
    %v371 = vunpack.c.l.b16 %v161
    %v372 = vunpack.c.h.b16 %v161
    %v373 = vunpack.c.l.b16 %v162
    %v374 = vunpack.c.h.b16 %v162
    %v375 = vpack.c.b16 %v251, %v247
    %v376 = vpack.c.b16 %v252, %v248
    %v377 = vpack.c.b16 %v253, %v249
    %v378 = vpack.c.b16 %v254, %v250
    %v379 = vpack.c.b16 %v259, %v255
    %v380 = vpack.c.b16 %v260, %v256
    %v381 = vpack.c.b16 %v261, %v257
    %v382 = vpack.c.b16 %v262, %v258
    %v383 = vpack.c.b16 %v267, %v263
    %v384 = vpack.c.b16 %v268, %v264
    %v385 = vpack.c.b16 %v269, %v265
    %v386 = vpack.c.b16 %v270, %v266
    %v387 = vpack.c.b16 %v275, %v271
    %v388 = vpack.c.b16 %v276, %v272
    %v389 = vpack.c.b16 %v277, %v273
    %v390 = vpack.c.b16 %v278, %v274
    %v391 = vpack.c.b16 %v283, %v279
    %v392 = vpack.c.b16 %v284, %v280
    %v393 = vpack.c.b16 %v285, %v281
    %v394 = vpack.c.b16 %v286, %v282
    %v395 = vpack.c.b16 %v291, %v287
    %v396 = vpack.c.b16 %v292, %v288
    %v397 = vpack.c.b16 %v293, %v289
    %v398 = vpack.c.b16 %v294, %v290
    %v399 = vpack.c.b16 %v299, %v295
    %v400 = vpack.c.b16 %v300, %v296
    %v401 = vpack.c.b16 %v301, %v297
    %v402 = vpack.c.b16 %v302, %v298
    %v403 = vpack.c.b16 %v307, %v303
    %v404 = vpack.c.b16 %v308, %v304
    %v405 = vpack.c.b16 %v309, %v305
    %v406 = vpack.c.b16 %v310, %v306
    %v407 = vpack.c.b16 %v315, %v311
    %v408 = vpack.c.b16 %v316, %v312
    %v409 = vpack.c.b16 %v317, %v313
    %v410 = vpack.c.b16 %v318, %v314
    %v411 = vpack.c.b16 %v323, %v319
    %v412 = vpack.c.b16 %v324, %v320
    %v413 = vpack.c.b16 %v325, %v321
    %v414 = vpack.c.b16 %v326, %v322
    %v415 = vpack.c.b16 %v331, %v327
    %v416 = vpack.c.b16 %v332, %v328
    %v417 = vpack.c.b16 %v333, %v329
    %v418 = vpack.c.b16 %v334, %v330
    %v419 = vpack.c.b16 %v339, %v335
    %v420 = vpack.c.b16 %v340, %v336
    %v421 = vpack.c.b16 %v341, %v337
    %v422 = vpack.c.b16 %v342, %v338
    %v423 = vpack.c.b16 %v347, %v343
    %v424 = vpack.c.b16 %v348, %v344
    %v425 = vpack.c.b16 %v349, %v345
    %v426 = vpack.c.b16 %v350, %v346
    %v427 = vpack.c.b16 %v355, %v351
    %v428 = vpack.c.b16 %v356, %v352
    %v429 = vpack.c.b16 %v357, %v353
    %v430 = vpack.c.b16 %v358, %v354
    %v431 = vpack.c.b16 %v363, %v359
    %v432 = vpack.c.b16 %v364, %v360
    %v433 = vpack.c.b16 %v365, %v361
    %v434 = vpack.c.b16 %v366, %v362
    %v435 = vpack.c.b16 %v371, %v367
    %v436 = vpack.c.b16 %v372, %v368
    %v437 = vpack.c.b16 %v373, %v369
    %v438 = vpack.c.b16 %v374, %v370
    %503 = vmatpush.bf16.msra.mxu0 %v403
    %504 = vmatpush.bf16.msra.mxu0 %v399
    %505 = vmatpush.bf16.msra.mxu0 %v395
    %506 = vmatpush.bf16.msra.mxu0 %v391
    %507 = vmatpush.bf16.msra.mxu0 %v387
    %508 = vmatpush.bf16.msra.mxu0 %v383
    %509 = vmatpush.bf16.msra.mxu0 %v379
    %510 = vmatpush.bf16.msra.mxu0 %v375
    %511 = vmatmul.bf16.gmra.mxu0 %v175
    %v512 = vpop.f32.mrf.mxu0
    %v513 = vadd.f32 0.0, %v512
    %v514 = vpop.f32.mrf.mxu0
    %v515 = vadd.f32 0.0, %v514
    %516 = vmatmul.bf16.gmra.mxu0 %v177
    %v517 = vpop.f32.mrf.mxu0
    %v518 = vadd.f32 0.0, %v517
    %v519 = vpop.f32.mrf.mxu0
    %v520 = vadd.f32 0.0, %v519
    %521 = vdwg.mxu0
    %522 = vmatpush.bf16.msra.mxu0 %v435
    %523 = vmatpush.bf16.msra.mxu0 %v431
    %524 = vmatpush.bf16.msra.mxu0 %v427
    %525 = vmatpush.bf16.msra.mxu0 %v423
    %526 = vmatpush.bf16.msra.mxu0 %v419
    %527 = vmatpush.bf16.msra.mxu0 %v415
    %528 = vmatpush.bf16.msra.mxu0 %v411
    %529 = vmatpush.bf16.msra.mxu0 %v407
    %530 = vmatmul.bf16.gmra.mxu0 %v176
    %v531 = vpop.f32.mrf.mxu0
    %v532 = vadd.f32 %v513, %v531
    %v533 = vpop.f32.mrf.mxu0
    %v534 = vadd.f32 %v515, %v533
    %535 = vmatmul.bf16.gmra.mxu0 %v178
    %v536 = vpop.f32.mrf.mxu0
    %v537 = vadd.f32 %v518, %v536
    %v538 = vpop.f32.mrf.mxu0
    %v539 = vadd.f32 %v520, %v538
    %540 = vdwg.mxu0
    %541 = vmatpush.bf16.msra.mxu0 %v404
    %542 = vmatpush.bf16.msra.mxu0 %v400
    %543 = vmatpush.bf16.msra.mxu0 %v396
    %544 = vmatpush.bf16.msra.mxu0 %v392
    %545 = vmatpush.bf16.msra.mxu0 %v388
    %546 = vmatpush.bf16.msra.mxu0 %v384
    %547 = vmatpush.bf16.msra.mxu0 %v380
    %548 = vmatpush.bf16.msra.mxu0 %v376
    %549 = vmatmul.bf16.gmra.mxu0 %v175
    %v550 = vpop.f32.mrf.mxu0
    %v551 = vadd.f32 0.0, %v550
    %v552 = vpop.f32.mrf.mxu0
    %v553 = vadd.f32 0.0, %v552
    %554 = vmatmul.bf16.gmra.mxu0 %v177
    %v555 = vpop.f32.mrf.mxu0
    %v556 = vadd.f32 0.0, %v555
    %v557 = vpop.f32.mrf.mxu0
    %v558 = vadd.f32 0.0, %v557
    %559 = vdwg.mxu0
    %560 = vmatpush.bf16.msra.mxu0 %v436
    %561 = vmatpush.bf16.msra.mxu0 %v432
    %562 = vmatpush.bf16.msra.mxu0 %v428
    %563 = vmatpush.bf16.msra.mxu0 %v424
    %564 = vmatpush.bf16.msra.mxu0 %v420
    %565 = vmatpush.bf16.msra.mxu0 %v416
    %566 = vmatpush.bf16.msra.mxu0 %v412
    %567 = vmatpush.bf16.msra.mxu0 %v408
    %568 = vmatmul.bf16.gmra.mxu0 %v176
    %v569 = vpop.f32.mrf.mxu0
    %v570 = vadd.f32 %v551, %v569
    %v571 = vpop.f32.mrf.mxu0
    %v572 = vadd.f32 %v553, %v571
    %573 = vmatmul.bf16.gmra.mxu0 %v178
    %v574 = vpop.f32.mrf.mxu0
    %v575 = vadd.f32 %v556, %v574
    %v576 = vpop.f32.mrf.mxu0
    %v577 = vadd.f32 %v558, %v576
    %578 = vdwg.mxu0
    %579 = vmatpush.bf16.msra.mxu0 %v405
    %580 = vmatpush.bf16.msra.mxu0 %v401
    %581 = vmatpush.bf16.msra.mxu0 %v397
    %582 = vmatpush.bf16.msra.mxu0 %v393
    %583 = vmatpush.bf16.msra.mxu0 %v389
    %584 = vmatpush.bf16.msra.mxu0 %v385
    %585 = vmatpush.bf16.msra.mxu0 %v381
    %586 = vmatpush.bf16.msra.mxu0 %v377
    %587 = vmatmul.bf16.gmra.mxu0 %v175
    %v588 = vpop.f32.mrf.mxu0
    %v589 = vadd.f32 0.0, %v588
    %v590 = vpop.f32.mrf.mxu0
    %v591 = vadd.f32 0.0, %v590
    %592 = vmatmul.bf16.gmra.mxu0 %v177
    %v593 = vpop.f32.mrf.mxu0
    %v594 = vadd.f32 0.0, %v593
    %v595 = vpop.f32.mrf.mxu0
    %v596 = vadd.f32 0.0, %v595
    %597 = vdwg.mxu0
    %598 = vmatpush.bf16.msra.mxu0 %v437
    %599 = vmatpush.bf16.msra.mxu0 %v433
    %600 = vmatpush.bf16.msra.mxu0 %v429
    %601 = vmatpush.bf16.msra.mxu0 %v425
    %602 = vmatpush.bf16.msra.mxu0 %v421
    %603 = vmatpush.bf16.msra.mxu0 %v417
    %604 = vmatpush.bf16.msra.mxu0 %v413
    %605 = vmatpush.bf16.msra.mxu0 %v409
    %606 = vmatmul.bf16.gmra.mxu0 %v176
    %v607 = vpop.f32.mrf.mxu0
    %v608 = vadd.f32 %v589, %v607
    %v609 = vpop.f32.mrf.mxu0
    %v610 = vadd.f32 %v591, %v609
    %611 = vmatmul.bf16.gmra.mxu0 %v178
    %v612 = vpop.f32.mrf.mxu0
    %v613 = vadd.f32 %v594, %v612
    %v614 = vpop.f32.mrf.mxu0
    %v615 = vadd.f32 %v596, %v614
    %616 = vdwg.mxu0
    %617 = vmatpush.bf16.msra.mxu0 %v406
    %618 = vmatpush.bf16.msra.mxu0 %v402
    %619 = vmatpush.bf16.msra.mxu0 %v398
    %620 = vmatpush.bf16.msra.mxu0 %v394
    %621 = vmatpush.bf16.msra.mxu0 %v390
    %622 = vmatpush.bf16.msra.mxu0 %v386
    %623 = vmatpush.bf16.msra.mxu0 %v382
    %624 = vmatpush.bf16.msra.mxu0 %v378
    %625 = vmatmul.bf16.gmra.mxu0 %v175
    %v626 = vpop.f32.mrf.mxu0
    %v627 = vadd.f32 0.0, %v626
    %v628 = vpop.f32.mrf.mxu0
    %v629 = vadd.f32 0.0, %v628
    %630 = vmatmul.bf16.gmra.mxu0 %v177
    %v631 = vpop.f32.mrf.mxu0
    %v632 = vadd.f32 0.0, %v631
    %v633 = vpop.f32.mrf.mxu0
    %v634 = vadd.f32 0.0, %v633
    %635 = vdwg.mxu0
    %636 = vmatpush.bf16.msra.mxu0 %v438
    %637 = vmatpush.bf16.msra.mxu0 %v434
    %638 = vmatpush.bf16.msra.mxu0 %v430
    %639 = vmatpush.bf16.msra.mxu0 %v426
    %640 = vmatpush.bf16.msra.mxu0 %v422
    %641 = vmatpush.bf16.msra.mxu0 %v418
    %642 = vmatpush.bf16.msra.mxu0 %v414
    %643 = vmatpush.bf16.msra.mxu0 %v410
    %644 = vmatmul.bf16.gmra.mxu0 %v176
    %v645 = vpop.f32.mrf.mxu0
    %v646 = vadd.f32 %v627, %v645
    %v647 = vpop.f32.mrf.mxu0
    %v648 = vadd.f32 %v629, %v647
    %649 = vmatmul.bf16.gmra.mxu0 %v178
    %v650 = vpop.f32.mrf.mxu0
    %v651 = vadd.f32 %v632, %v650
    %v652 = vpop.f32.mrf.mxu0
    %v653 = vadd.f32 %v634, %v652
    %654 = vdwg.mxu0
    %v655 = vld [vmem:[#allocation7] sm:$0xf]
    %v656 = vld [vmem:[#allocation8] sm:$0xf]
    %v657 = vadd.f32 %v532, %v534
    %v658 = vadd.f32 %v657, %v537
    %v659 = vadd.f32 %v658, %v539
    %v660 = vrot.slane %v659, 4
    %v661 = vadd.f32 %v659, %v660
    %v662 = vrot.slane %v661, 2
    %v663 = vadd.f32 %v661, %v662
    %v664 = vrot.slane %v663, 1
    %v665 = vadd.f32 %v663, %v664
    %v666 = vadd.f32 %v570, %v572
    %v667 = vadd.f32 %v666, %v575
    %v668 = vadd.f32 %v667, %v577
    %v669 = vrot.slane %v668, 4
    %v670 = vadd.f32 %v668, %v669
    %v671 = vrot.slane %v670, 2
    %v672 = vadd.f32 %v670, %v671
    %v673 = vrot.slane %v672, 1
    %v674 = vadd.f32 %v672, %v673
    %v675 = vadd.f32 %v608, %v610
    %v676 = vadd.f32 %v675, %v613
    %v677 = vadd.f32 %v676, %v615
    %v678 = vrot.slane %v677, 4
    %v679 = vadd.f32 %v677, %v678
    %v680 = vrot.slane %v679, 2
    %v681 = vadd.f32 %v679, %v680
    %v682 = vrot.slane %v681, 1
    %v683 = vadd.f32 %v681, %v682
    %v684 = vadd.f32 %v646, %v648
    %v685 = vadd.f32 %v684, %v651
    %v686 = vadd.f32 %v685, %v653
    %v687 = vrot.slane %v686, 4
    %v688 = vadd.f32 %v686, %v687
    %v689 = vrot.slane %v688, 2
    %v690 = vadd.f32 %v688, %v689
    %v691 = vrot.slane %v690, 1
    %v692 = vadd.f32 %v690, %v691
    %v693 = vmul.f32 %v532, %v532
    %v694 = vmul.f32 %v570, %v570
    %v695 = vmul.f32 %v608, %v608
    %v696 = vmul.f32 %v646, %v646
    %v697 = vmul.f32 %v534, %v534
    %v698 = vmul.f32 %v572, %v572
    %v699 = vmul.f32 %v610, %v610
    %v700 = vmul.f32 %v648, %v648
    %v701 = vmul.f32 %v537, %v537
    %v702 = vmul.f32 %v575, %v575
    %v703 = vmul.f32 %v613, %v613
    %v704 = vmul.f32 %v651, %v651
    %v705 = vmul.f32 %v539, %v539
    %v706 = vmul.f32 %v577, %v577
    %v707 = vmul.f32 %v615, %v615
    %v708 = vmul.f32 %v653, %v653
    %v709 = vadd.f32 %v693, %v697
    %v710 = vadd.f32 %v709, %v701
    %v711 = vadd.f32 %v710, %v705
    %v712 = vrot.slane %v711, 4
    %v713 = vadd.f32 %v711, %v712
    %v714 = vrot.slane %v713, 2
    %v715 = vadd.f32 %v713, %v714
    %v716 = vrot.slane %v715, 1
    %v717 = vadd.f32 %v715, %v716
    %v718 = vadd.f32 %v694, %v698
    %v719 = vadd.f32 %v718, %v702
    %v720 = vadd.f32 %v719, %v706
    %v721 = vrot.slane %v720, 4
    %v722 = vadd.f32 %v720, %v721
    %v723 = vrot.slane %v722, 2
    %v724 = vadd.f32 %v722, %v723
    %v725 = vrot.slane %v724, 1
    %v726 = vadd.f32 %v724, %v725
    %v727 = vadd.f32 %v695, %v699
    %v728 = vadd.f32 %v727, %v703
    %v729 = vadd.f32 %v728, %v707
    %v730 = vrot.slane %v729, 4
    %v731 = vadd.f32 %v729, %v730
    %v732 = vrot.slane %v731, 2
    %v733 = vadd.f32 %v731, %v732
    %v734 = vrot.slane %v733, 1
    %v735 = vadd.f32 %v733, %v734
    %v736 = vadd.f32 %v696, %v700
    %v737 = vadd.f32 %v736, %v704
    %v738 = vadd.f32 %v737, %v708
    %v739 = vrot.slane %v738, 4
    %v740 = vadd.f32 %v738, %v739
    %v741 = vrot.slane %v740, 2
    %v742 = vadd.f32 %v740, %v741
    %v743 = vrot.slane %v742, 1
    %v744 = vadd.f32 %v742, %v743
    %v745 = vmul.f32 %v665, 0.03125
    %v746 = vmul.f32 %v674, 0.03125
    %v747 = vmul.f32 %v683, 0.03125
    %v748 = vmul.f32 %v692, 0.03125
    %v749 = vmul.f32 %v717, 0.03125
    %v750 = vmul.f32 %v726, 0.03125
    %v751 = vmul.f32 %v735, 0.03125
    %v752 = vmul.f32 %v744, 0.03125
    %v753 = vmul.f32 %v745, %v745
    %v754 = vmul.f32 %v746, %v746
    %v755 = vmul.f32 %v747, %v747
    %v756 = vmul.f32 %v748, %v748
    %v757 = vsub.f32 %v749, %v753
    %v758 = vsub.f32 %v750, %v754
    %v759 = vsub.f32 %v751, %v755
    %v760 = vsub.f32 %v752, %v756
    %v761 = vmax.f32 %v757, 0.0
    %v762 = vmax.f32 %v758, 0.0
    %v763 = vmax.f32 %v759, 0.0
    %v764 = vmax.f32 %v760, 0.0
    %v765 = vadd.f32 %v761, 1e-05
    %v766 = vadd.f32 %v762, 1e-05
    %v767 = vadd.f32 %v763, 1e-05
    %v768 = vadd.f32 %v764, 1e-05
    %v769 = vrsqrt.pop %v765
    %v770 = vmul.f32 %v769, %v765
    %v771 = vmul.f32 %v770, %v769
    %v772 = vmul.f32 0.5, %v771
    %v773 = vsub.f32 1.5, %v772
    %v774 = vmul.f32 %v769, %v773
    %vm775 = vweird.f32 %v765
    %vm776 = vweird.f32 %v769
    %vm777 = vmor %vm775, %vm776
    %v778 = vsel %vm777, %v769, %v774
    %v779 = vrsqrt.pop %v766
    %v780 = vmul.f32 %v779, %v766
    %v781 = vmul.f32 %v780, %v779
    %v782 = vmul.f32 0.5, %v781
    %v783 = vsub.f32 1.5, %v782
    %v784 = vmul.f32 %v779, %v783
    %vm785 = vweird.f32 %v766
    %vm786 = vweird.f32 %v779
    %vm787 = vmor %vm785, %vm786
    %v788 = vsel %vm787, %v779, %v784
    %v789 = vrsqrt.pop %v767
    %v790 = vmul.f32 %v789, %v767
    %v791 = vmul.f32 %v790, %v789
    %v792 = vmul.f32 0.5, %v791
    %v793 = vsub.f32 1.5, %v792
    %v794 = vmul.f32 %v789, %v793
    %vm795 = vweird.f32 %v767
    %vm796 = vweird.f32 %v789
    %vm797 = vmor %vm795, %vm796
    %v798 = vsel %vm797, %v789, %v794
    %v799 = vrsqrt.pop %v768
    %v800 = vmul.f32 %v799, %v768
    %v801 = vmul.f32 %v800, %v799
    %v802 = vmul.f32 0.5, %v801
    %v803 = vsub.f32 1.5, %v802
    %v804 = vmul.f32 %v799, %v803
    %vm805 = vweird.f32 %v768
    %vm806 = vweird.f32 %v799
    %vm807 = vmor %vm805, %vm806
    %v808 = vsel %vm807, %v799, %v804
    %v810 = vperm.slane %v655, 0
    %v811 = vperm.slane %v655, 1
    %v812 = vperm.slane %v655, 2
    %v813 = vperm.slane %v655, 3
    %v818 = vmul.f32 %v778, %v810
    %v819 = vmul.f32 %v788, %v811
    %v820 = vmul.f32 %v798, %v812
    %v821 = vmul.f32 %v808, %v813
    %v822 = vmul.f32 %v745, %v818
    %v823 = vmul.f32 %v746, %v819
    %v824 = vmul.f32 %v747, %v820
    %v825 = vmul.f32 %v748, %v821
    %v830 = vrot.slane %v823, 7
    %v831 = vrot.slane %v824, 6
    %v832 = vrot.slane %v825, 5
    %vm833 = vcmask 1040384
    %v834 = vsel %vm833, %v822, %v830
    %vm835 = vcmask 1042434
    %v836 = vsel %vm835, %v831, %v832
    %vm837 = vcmask 1041408
    %v838 = vsel %vm837, %v834, %v836
    %v840 = vsub.f32 %v656, %v838
    %v841 = vperm.slane %v818, 0
    %v842 = vperm.slane %v819, 0
    %v843 = vperm.slane %v820, 0
    %v844 = vperm.slane %v821, 0
    %v845 = vmul.f32 %v532, %v841
    %v846 = vmul.f32 %v570, %v842
    %v847 = vmul.f32 %v608, %v843
    %v848 = vmul.f32 %v646, %v844
    %v849 = vmul.f32 %v534, %v841
    %v850 = vmul.f32 %v572, %v842
    %v851 = vmul.f32 %v610, %v843
    %v852 = vmul.f32 %v648, %v844
    %v853 = vmul.f32 %v537, %v841
    %v854 = vmul.f32 %v575, %v842
    %v855 = vmul.f32 %v613, %v843
    %v856 = vmul.f32 %v651, %v844
    %v857 = vmul.f32 %v539, %v841
    %v858 = vmul.f32 %v577, %v842
    %v859 = vmul.f32 %v615, %v843
    %v860 = vmul.f32 %v653, %v844
    %v862 = vperm.slane %v840, 0
    %v863 = vperm.slane %v840, 1
    %v864 = vperm.slane %v840, 2
    %v865 = vperm.slane %v840, 3
    %v870 = vadd.f32 %v845, %v862
    %v871 = vadd.f32 %v846, %v863
    %v872 = vadd.f32 %v847, %v864
    %v873 = vadd.f32 %v848, %v865
    %v874 = vadd.f32 %v849, %v862
    %v875 = vadd.f32 %v850, %v863
    %v876 = vadd.f32 %v851, %v864
    %v877 = vadd.f32 %v852, %v865
    %v878 = vadd.f32 %v853, %v862
    %v879 = vadd.f32 %v854, %v863
    %v880 = vadd.f32 %v855, %v864
    %v881 = vadd.f32 %v856, %v865
    %v882 = vadd.f32 %v857, %v862
    %v883 = vadd.f32 %v858, %v863
    %v884 = vadd.f32 %v859, %v864
    %v885 = vadd.f32 %v860, %v865
    %v886 = vmax.f32 %v870, 0.0
    %v887 = vmax.f32 %v871, 0.0
    %v888 = vmax.f32 %v872, 0.0
    %v889 = vmax.f32 %v873, 0.0
    %v890 = vmax.f32 %v874, 0.0
    %v891 = vmax.f32 %v875, 0.0
    %v892 = vmax.f32 %v876, 0.0
    %v893 = vmax.f32 %v877, 0.0
    %v894 = vmax.f32 %v878, 0.0
    %v895 = vmax.f32 %v879, 0.0
    %v896 = vmax.f32 %v880, 0.0
    %v897 = vmax.f32 %v881, 0.0
    %v898 = vmax.f32 %v882, 0.0
    %v899 = vmax.f32 %v883, 0.0
    %v900 = vmax.f32 %v884, 0.0
    %v901 = vmax.f32 %v885, 0.0
    %v902 = vpack.c.bf16 %v890, %v886
    %v903 = vpack.c.bf16 %v891, %v887
    %v904 = vpack.c.bf16 %v892, %v888
    %v905 = vpack.c.bf16 %v893, %v889
    %v906 = vpack.c.bf16 %v898, %v894
    %v907 = vpack.c.bf16 %v899, %v895
    %v908 = vpack.c.bf16 %v900, %v896
    %v909 = vpack.c.bf16 %v901, %v897
    %v910 = vld [vmem:[#allocation10] sm:$0xf]
    %v911 = vld [vmem:[#allocation10 + $0x4] sm:$0xf]
    %v912 = vld [vmem:[#allocation10 + $0x8] sm:$0xf]
    %v913 = vld [vmem:[#allocation10 + $0xc] sm:$0xf]
    %v914 = vld [vmem:[#allocation10 + $0x10] sm:$0xf]
    %v915 = vld [vmem:[#allocation10 + $0x14] sm:$0xf]
    %v916 = vld [vmem:[#allocation10 + $0x18] sm:$0xf]
    %v917 = vld [vmem:[#allocation10 + $0x1c] sm:$0xf]
    %v918 = vld [vmem:[#allocation10 + $0x20] sm:$0xf]
    %v919 = vld [vmem:[#allocation10 + $0x24] sm:$0xf]
    %v920 = vld [vmem:[#allocation10 + $0x28] sm:$0xf]
    %v921 = vld [vmem:[#allocation10 + $0x2c] sm:$0xf]
    %v922 = vld [vmem:[#allocation10 + $0x30] sm:$0xf]
    %v923 = vld [vmem:[#allocation10 + $0x34] sm:$0xf]
    %v924 = vld [vmem:[#allocation10 + $0x38] sm:$0xf]
    %v925 = vld [vmem:[#allocation10 + $0x3c] sm:$0xf]
    %v926 = vld [vmem:[#allocation10 + $0x40] sm:$0xf]
    %v927 = vld [vmem:[#allocation10 + $0x44] sm:$0xf]
    %v928 = vld [vmem:[#allocation10 + $0x48] sm:$0xf]
    %v929 = vld [vmem:[#allocation10 + $0x4c] sm:$0xf]
    %v930 = vld [vmem:[#allocation10 + $0x50] sm:$0xf]
    %v931 = vld [vmem:[#allocation10 + $0x54] sm:$0xf]
    %v932 = vld [vmem:[#allocation10 + $0x58] sm:$0xf]
    %v933 = vld [vmem:[#allocation10 + $0x5c] sm:$0xf]
    %v934 = vld [vmem:[#allocation10 + $0x60] sm:$0xf]
    %v935 = vld [vmem:[#allocation10 + $0x64] sm:$0xf]
    %v936 = vld [vmem:[#allocation10 + $0x68] sm:$0xf]
    %v937 = vld [vmem:[#allocation10 + $0x6c] sm:$0xf]
    %v938 = vld [vmem:[#allocation10 + $0x70] sm:$0xf]
    %v939 = vld [vmem:[#allocation10 + $0x74] sm:$0xf]
    %v940 = vld [vmem:[#allocation10 + $0x78] sm:$0xf]
    %v941 = vld [vmem:[#allocation10 + $0x7c] sm:$0xf]
    %v942 = vld [vmem:[#allocation10 + $0x80] sm:$0xf]
    %v943 = vld [vmem:[#allocation10 + $0x84] sm:$0xf]
    %v944 = vld [vmem:[#allocation10 + $0x88] sm:$0xf]
    %v945 = vld [vmem:[#allocation10 + $0x8c] sm:$0xf]
    %v946 = vld [vmem:[#allocation10 + $0x90] sm:$0xf]
    %v947 = vld [vmem:[#allocation10 + $0x94] sm:$0xf]
    %v948 = vld [vmem:[#allocation10 + $0x98] sm:$0xf]
    %v949 = vld [vmem:[#allocation10 + $0x9c] sm:$0xf]
    %v950 = vld [vmem:[#allocation10 + $0xa0] sm:$0xf]
    %v951 = vld [vmem:[#allocation10 + $0xa4] sm:$0xf]
    %v952 = vld [vmem:[#allocation10 + $0xa8] sm:$0xf]
    %v953 = vld [vmem:[#allocation10 + $0xac] sm:$0xf]
    %v954 = vld [vmem:[#allocation10 + $0xb0] sm:$0xf]
    %v955 = vld [vmem:[#allocation10 + $0xb4] sm:$0xf]
    %v956 = vld [vmem:[#allocation10 + $0xb8] sm:$0xf]
    %v957 = vld [vmem:[#allocation10 + $0xbc] sm:$0xf]
    %v958 = vld [vmem:[#allocation10 + $0xc0] sm:$0xf]
    %v959 = vld [vmem:[#allocation10 + $0xc4] sm:$0xf]
    %v960 = vld [vmem:[#allocation10 + $0xc8] sm:$0xf]
    %v961 = vld [vmem:[#allocation10 + $0xcc] sm:$0xf]
    %v962 = vld [vmem:[#allocation10 + $0xd0] sm:$0xf]
    %v963 = vld [vmem:[#allocation10 + $0xd4] sm:$0xf]
    %v964 = vld [vmem:[#allocation10 + $0xd8] sm:$0xf]
    %v965 = vld [vmem:[#allocation10 + $0xdc] sm:$0xf]
    %v966 = vld [vmem:[#allocation10 + $0xe0] sm:$0xf]
    %v967 = vld [vmem:[#allocation10 + $0xe4] sm:$0xf]
    %v968 = vld [vmem:[#allocation10 + $0xe8] sm:$0xf]
    %v969 = vld [vmem:[#allocation10 + $0xec] sm:$0xf]
    %v970 = vld [vmem:[#allocation10 + $0xf0] sm:$0xf]
    %v971 = vld [vmem:[#allocation10 + $0xf4] sm:$0xf]
    %v972 = vld [vmem:[#allocation10 + $0xf8] sm:$0xf]
    %v973 = vld [vmem:[#allocation10 + $0xfc] sm:$0xf]
    %v1038 = vunpack.c.l.b16 %v910
    %v1039 = vunpack.c.l.b16 %v911
    %v1040 = vunpack.c.l.b16 %v912
    %v1041 = vunpack.c.l.b16 %v913
    %v1042 = vunpack.c.l.b16 %v914
    %v1043 = vunpack.c.l.b16 %v915
    %v1044 = vunpack.c.l.b16 %v916
    %v1045 = vunpack.c.l.b16 %v917
    %v1046 = vunpack.c.l.b16 %v918
    %v1047 = vunpack.c.l.b16 %v919
    %v1048 = vunpack.c.l.b16 %v920
    %v1049 = vunpack.c.l.b16 %v921
    %v1050 = vunpack.c.l.b16 %v922
    %v1051 = vunpack.c.l.b16 %v923
    %v1052 = vunpack.c.l.b16 %v924
    %v1053 = vunpack.c.l.b16 %v925
    %v1054 = vunpack.c.l.b16 %v926
    %v1055 = vunpack.c.l.b16 %v927
    %v1056 = vunpack.c.l.b16 %v928
    %v1057 = vunpack.c.l.b16 %v929
    %v1058 = vunpack.c.l.b16 %v930
    %v1059 = vunpack.c.l.b16 %v931
    %v1060 = vunpack.c.l.b16 %v932
    %v1061 = vunpack.c.l.b16 %v933
    %v1062 = vunpack.c.l.b16 %v934
    %v1063 = vunpack.c.l.b16 %v935
    %v1064 = vunpack.c.l.b16 %v936
    %v1065 = vunpack.c.l.b16 %v937
    %v1066 = vunpack.c.l.b16 %v938
    %v1067 = vunpack.c.l.b16 %v939
    %v1068 = vunpack.c.l.b16 %v940
    %v1069 = vunpack.c.l.b16 %v941
    %v1070 = vunpack.c.l.b16 %v942
    %v1071 = vunpack.c.l.b16 %v943
    %v1072 = vunpack.c.l.b16 %v944
    %v1073 = vunpack.c.l.b16 %v945
    %v1074 = vunpack.c.l.b16 %v946
    %v1075 = vunpack.c.l.b16 %v947
    %v1076 = vunpack.c.l.b16 %v948
    %v1077 = vunpack.c.l.b16 %v949
    %v1078 = vunpack.c.l.b16 %v950
    %v1079 = vunpack.c.l.b16 %v951
    %v1080 = vunpack.c.l.b16 %v952
    %v1081 = vunpack.c.l.b16 %v953
    %v1082 = vunpack.c.l.b16 %v954
    %v1083 = vunpack.c.l.b16 %v955
    %v1084 = vunpack.c.l.b16 %v956
    %v1085 = vunpack.c.l.b16 %v957
    %v1086 = vunpack.c.l.b16 %v958
    %v1087 = vunpack.c.l.b16 %v959
    %v1088 = vunpack.c.l.b16 %v960
    %v1089 = vunpack.c.l.b16 %v961
    %v1090 = vunpack.c.l.b16 %v962
    %v1091 = vunpack.c.l.b16 %v963
    %v1092 = vunpack.c.l.b16 %v964
    %v1093 = vunpack.c.l.b16 %v965
    %v1094 = vunpack.c.l.b16 %v966
    %v1095 = vunpack.c.l.b16 %v967
    %v1096 = vunpack.c.l.b16 %v968
    %v1097 = vunpack.c.l.b16 %v969
    %v1098 = vunpack.c.l.b16 %v970
    %v1099 = vunpack.c.l.b16 %v971
    %v1100 = vunpack.c.l.b16 %v972
    %v1101 = vunpack.c.l.b16 %v973
    %v1102 = vpack.c.b16 %v1039, %v1038
    %v1103 = vpack.c.b16 %v1041, %v1040
    %v1104 = vpack.c.b16 %v1043, %v1042
    %v1105 = vpack.c.b16 %v1045, %v1044
    %v1106 = vpack.c.b16 %v1047, %v1046
    %v1107 = vpack.c.b16 %v1049, %v1048
    %v1108 = vpack.c.b16 %v1051, %v1050
    %v1109 = vpack.c.b16 %v1053, %v1052
    %v1110 = vpack.c.b16 %v1055, %v1054
    %v1111 = vpack.c.b16 %v1057, %v1056
    %v1112 = vpack.c.b16 %v1059, %v1058
    %v1113 = vpack.c.b16 %v1061, %v1060
    %v1114 = vpack.c.b16 %v1063, %v1062
    %v1115 = vpack.c.b16 %v1065, %v1064
    %v1116 = vpack.c.b16 %v1067, %v1066
    %v1117 = vpack.c.b16 %v1069, %v1068
    %v1118 = vpack.c.b16 %v1071, %v1070
    %v1119 = vpack.c.b16 %v1073, %v1072
    %v1120 = vpack.c.b16 %v1075, %v1074
    %v1121 = vpack.c.b16 %v1077, %v1076
    %v1122 = vpack.c.b16 %v1079, %v1078
    %v1123 = vpack.c.b16 %v1081, %v1080
    %v1124 = vpack.c.b16 %v1083, %v1082
    %v1125 = vpack.c.b16 %v1085, %v1084
    %v1126 = vpack.c.b16 %v1087, %v1086
    %v1127 = vpack.c.b16 %v1089, %v1088
    %v1128 = vpack.c.b16 %v1091, %v1090
    %v1129 = vpack.c.b16 %v1093, %v1092
    %v1130 = vpack.c.b16 %v1095, %v1094
    %v1131 = vpack.c.b16 %v1097, %v1096
    %v1132 = vpack.c.b16 %v1099, %v1098
    %v1133 = vpack.c.b16 %v1101, %v1100
    %1166 = vmatpush.bf16.msra.mxu0 %v1109
    %1167 = vmatpush.bf16.msra.mxu0 %v1108
    %1168 = vmatpush.bf16.msra.mxu0 %v1107
    %1169 = vmatpush.bf16.msra.mxu0 %v1106
    %1170 = vmatpush.bf16.msra.mxu0 %v1105
    %1171 = vmatpush.bf16.msra.mxu0 %v1104
    %1172 = vmatpush.bf16.msra.mxu0 %v1103
    %1173 = vmatpush.bf16.msra.mxu0 %v1102
    %1174 = vmatmul.bf16.gmra.mxu0 %v902
    %v1175 = vpop.f32.mrf.mxu0
    %v1176 = vadd.f32 0.0, %v1175
    %v1177 = vpop.f32.mrf.mxu0
    %v1178 = vadd.f32 0.0, %v1177
    %1179 = vmatmul.bf16.gmra.mxu0 %v906
    %v1180 = vpop.f32.mrf.mxu0
    %v1181 = vadd.f32 0.0, %v1180
    %v1182 = vpop.f32.mrf.mxu0
    %v1183 = vadd.f32 0.0, %v1182
    %1184 = vdwg.mxu0
    %1185 = vmatpush.bf16.msra.mxu0 %v1117
    %1186 = vmatpush.bf16.msra.mxu0 %v1116
    %1187 = vmatpush.bf16.msra.mxu0 %v1115
    %1188 = vmatpush.bf16.msra.mxu0 %v1114
    %1189 = vmatpush.bf16.msra.mxu0 %v1113
    %1190 = vmatpush.bf16.msra.mxu0 %v1112
    %1191 = vmatpush.bf16.msra.mxu0 %v1111
    %1192 = vmatpush.bf16.msra.mxu0 %v1110
    %1193 = vmatmul.bf16.gmra.mxu0 %v903
    %v1194 = vpop.f32.mrf.mxu0
    %v1195 = vadd.f32 %v1176, %v1194
    %v1196 = vpop.f32.mrf.mxu0
    %v1197 = vadd.f32 %v1178, %v1196
    %1198 = vmatmul.bf16.gmra.mxu0 %v907
    %v1199 = vpop.f32.mrf.mxu0
    %v1200 = vadd.f32 %v1181, %v1199
    %v1201 = vpop.f32.mrf.mxu0
    %v1202 = vadd.f32 %v1183, %v1201
    %1203 = vdwg.mxu0
    %1204 = vmatpush.bf16.msra.mxu0 %v1125
    %1205 = vmatpush.bf16.msra.mxu0 %v1124
    %1206 = vmatpush.bf16.msra.mxu0 %v1123
    %1207 = vmatpush.bf16.msra.mxu0 %v1122
    %1208 = vmatpush.bf16.msra.mxu0 %v1121
    %1209 = vmatpush.bf16.msra.mxu0 %v1120
    %1210 = vmatpush.bf16.msra.mxu0 %v1119
    %1211 = vmatpush.bf16.msra.mxu0 %v1118
    %1212 = vmatmul.bf16.gmra.mxu0 %v904
    %v1213 = vpop.f32.mrf.mxu0
    %v1214 = vadd.f32 %v1195, %v1213
    %v1215 = vpop.f32.mrf.mxu0
    %v1216 = vadd.f32 %v1197, %v1215
    %1217 = vmatmul.bf16.gmra.mxu0 %v908
    %v1218 = vpop.f32.mrf.mxu0
    %v1219 = vadd.f32 %v1200, %v1218
    %v1220 = vpop.f32.mrf.mxu0
    %v1221 = vadd.f32 %v1202, %v1220
    %1222 = vdwg.mxu0
    %1223 = vmatpush.bf16.msra.mxu0 %v1133
    %1224 = vmatpush.bf16.msra.mxu0 %v1132
    %1225 = vmatpush.bf16.msra.mxu0 %v1131
    %1226 = vmatpush.bf16.msra.mxu0 %v1130
    %1227 = vmatpush.bf16.msra.mxu0 %v1129
    %1228 = vmatpush.bf16.msra.mxu0 %v1128
    %1229 = vmatpush.bf16.msra.mxu0 %v1127
    %1230 = vmatpush.bf16.msra.mxu0 %v1126
    %1231 = vmatmul.bf16.gmra.mxu0 %v905
    %v1232 = vpop.f32.mrf.mxu0
    %v1233 = vadd.f32 %v1214, %v1232
    %v1234 = vpop.f32.mrf.mxu0
    %v1235 = vadd.f32 %v1216, %v1234
    %1236 = vmatmul.bf16.gmra.mxu0 %v909
    %v1237 = vpop.f32.mrf.mxu0
    %v1238 = vadd.f32 %v1219, %v1237
    %v1239 = vpop.f32.mrf.mxu0
    %v1240 = vadd.f32 %v1221, %v1239
    %1241 = vdwg.mxu0
    %v1242 = vmul.f32 %v1233, %v1233
    %v1243 = vmul.f32 %v1235, %v1235
    %v1244 = vmul.f32 %v1238, %v1238
    %v1245 = vmul.f32 %v1240, %v1240
    %1246 = vadd.xlane.f32.xlu0 %v1242
    %v1247 = vpop.xlane.xlu0 %1246
    %1248 = vadd.xlane.f32.xlu0 %v1243
    %v1249 = vpop.xlane.xlu0 %1248
    %1250 = vadd.xlane.f32.xlu0 %v1244
    %v1251 = vpop.xlane.xlu0 %1250
    %1252 = vadd.xlane.f32.xlu0 %v1245
    %v1253 = vpop.xlane.xlu0 %1252
    %v1254 = vmax.f32 %v1247, 1e-24
    %v1255 = vmax.f32 %v1249, 1e-24
    %v1256 = vmax.f32 %v1251, 1e-24
    %v1257 = vmax.f32 %v1253, 1e-24
    %v1258 = vrsqrt.pop %v1254
    %v1259 = vmul.f32 %v1258, %v1254
    %v1260 = vmul.f32 %v1259, %v1258
    %v1261 = vmul.f32 0.5, %v1260
    %v1262 = vsub.f32 1.5, %v1261
    %v1263 = vmul.f32 %v1258, %v1262
    %vm1264 = vweird.f32 %v1254
    %vm1265 = vweird.f32 %v1258
    %vm1266 = vmor %vm1264, %vm1265
    %v1267 = vsel %vm1266, %v1258, %v1263
    %v1268 = vrsqrt.pop %v1255
    %v1269 = vmul.f32 %v1268, %v1255
    %v1270 = vmul.f32 %v1269, %v1268
    %v1271 = vmul.f32 0.5, %v1270
    %v1272 = vsub.f32 1.5, %v1271
    %v1273 = vmul.f32 %v1268, %v1272
    %vm1274 = vweird.f32 %v1255
    %vm1275 = vweird.f32 %v1268
    %vm1276 = vmor %vm1274, %vm1275
    %v1277 = vsel %vm1276, %v1268, %v1273
    %v1278 = vrsqrt.pop %v1256
    %v1279 = vmul.f32 %v1278, %v1256
    %v1280 = vmul.f32 %v1279, %v1278
    %v1281 = vmul.f32 0.5, %v1280
    %v1282 = vsub.f32 1.5, %v1281
    %v1283 = vmul.f32 %v1278, %v1282
    %vm1284 = vweird.f32 %v1256
    %vm1285 = vweird.f32 %v1278
    %vm1286 = vmor %vm1284, %vm1285
    %v1287 = vsel %vm1286, %v1278, %v1283
    %v1288 = vrsqrt.pop %v1257
    %v1289 = vmul.f32 %v1288, %v1257
    %v1290 = vmul.f32 %v1289, %v1288
    %v1291 = vmul.f32 0.5, %v1290
    %v1292 = vsub.f32 1.5, %v1291
    %v1293 = vmul.f32 %v1288, %v1292
    %vm1294 = vweird.f32 %v1257
    %vm1295 = vweird.f32 %v1288
    %vm1296 = vmor %vm1294, %vm1295
    %v1297 = vsel %vm1296, %v1288, %v1293
    %v1298 = vmul.f32 %v1233, %v1267
    %v1299 = vmul.f32 %v1235, %v1277
    %v1300 = vmul.f32 %v1238, %v1287
    %v1301 = vmul.f32 %v1240, %v1297
    %1302 = vst [vmem:[#allocation11] sm:$0xff] %v1298
    %1303 = vst [vmem:[#allocation11 + $0x8] sm:$0xff] %v1299
    %1304 = vst [vmem:[#allocation11 + $0x10] sm:$0xff] %v1300
    %1305 = vst [vmem:[#allocation11 + $0x18] sm:$0xff] %v1301
    // Predicated region
    $region42: #{tpu_custom_call.1} parent=1 // pred_check
      _
    $region43: #{tpu_custom_call.1} parent=1 // pred_check_branch
      %1307 = sbr.rel (0) target = $region45
    $region44: #{tpu_custom_call.1} parent=1 // pred_region
      %1309 = vsyncadd [#allocation4], 0
      %s1310 = sshll.u32 [#allocation11], 4
      %s1311 = int_to_ptr.vmem [resolvable:$true] %s1310
      %s1312 = sshll.u32 %s5, 4
      %s1313 = int_to_ptr.hbm [resolvable:$true] %s1312
      %1318 = dma.vmem_to_hbm [thread:$0]  %s1311, 512, %s1313, [#allocation4], 128, 128, 8
    $region45: #{tpu_custom_call.1} parent=1 // pred_fallthru
      _
    // Predicated region
    $region46: #{tpu_custom_call.1} parent=1 // pred_check
      _
    $region47: #{tpu_custom_call.1} parent=1 // pred_check_branch
      %1320 = sbr.rel (0) target = $region49
    $region48: #{tpu_custom_call.1} parent=1 // pred_region
      %1322 = dma.done [#allocation4], 512
    $region49: #{tpu_custom_call.1} parent=1 // pred_fallthru
      _
    %1323 = vsyncpa [#allocation3], 1
    %1324 = vsyncpa [#allocation6], 1
    %1325 = vsyncpa [#allocation9], 1
    %1326 = vsyncpa [#allocation4], 1

</llo_original>
